<compile_context>
chip_gen: v6e
topology: v6e:2x2x1
jax: 0.10.0
libtpu: 0.0.40
codegen_flags: <defaults>
</compile_context>

<pallas_src>
import functools

import jax
import jax.numpy as jnp
from jax.experimental import pallas as pl
from jax.experimental.pallas import tpu as pltpu

LANES = 128
TILE_ROWS = 1024       # rows per grid step (f32 input block = 512 KiB)
NUM_CORES = 2          # leading parallel axis; exploited by v7x megacore
OUT_ROWS = 8           # one lane-dense (8, 128) tile of partial sums per slot


def _rmse_kernel(yhat_ref, y_ref, out_ref, acc_ref, *,
                 rows, tile_rows, tiles_per_slot, needs_mask):
    c = pl.program_id(0)   # partial-sum slot (a TensorCore on v7x)
    i = pl.program_id(1)   # row-tile index within this slot's slice

    @pl.when(i == 0)
    def _():
        acc_ref[...] = jnp.zeros_like(acc_ref)

    # astype is a no-op for f32 inputs; upcasts bf16/etc. for free on the VPU.
    d = yhat_ref[...].astype(jnp.float32) - y_ref[...].astype(jnp.float32)
    d2 = d * d

    if needs_mask:
        # Mask rows past the real extent (ragged last tile / surplus tiles of
        # this slot). Uses the *logical* (unclamped) tile index, so surplus
        # tiles that re-read a valid block contribute exactly zero.
        base_row = (c * tiles_per_slot + i) * tile_rows
        row_ids = jax.lax.broadcasted_iota(jnp.int32, d2.shape, 0)
        d2 = jnp.where(base_row + row_ids < rows, d2, 0.0)

    acc_ref[...] += d2   # element-wise VPU accumulate; no per-step XLU reduce

    @pl.when(i == pl.num_programs(1) - 1)
    def _():
        # One cross-lane/sublane reduce per slot, written as a lane-dense tile.
        s = jnp.sum(acc_ref[...])
        out_ref[...] = jnp.broadcast_to(s, out_ref.shape).astype(jnp.float32)


def rmse_loss(yhat, y):
    assert yhat.shape == y.shape, "yhat and y must have the same shape"
    total_n = yhat.size
    if total_n == 0:
        # torch's mean-of-empty is NaN
        return jnp.float32(jnp.nan)

    # No dtype cast here (would add an extra HBM pass) -- the kernel upcasts.
    yh = jnp.ravel(yhat)
    yy = jnp.ravel(y)

    # Only a ragged lane remainder forces a pad; the common case (element
    # count divisible by 128) is a free reshape -- no extra HBM copy.
    lane_pad = (-total_n) % LANES
    if lane_pad:
        yh = jnp.pad(yh, (0, lane_pad))
        yy = jnp.pad(yy, (0, lane_pad))
    rows = (total_n + lane_pad) // LANES
    yh2 = yh.reshape(rows, LANES)
    yy2 = yy.reshape(rows, LANES)

    tile_rows = min(TILE_ROWS, rows)          # full dim if the slab is small
    n_tiles = pl.cdiv(rows, tile_rows)
    num_slots = min(NUM_CORES, n_tiles)       # no duplicated DMA on tiny inputs
    tiles_per_slot = pl.cdiv(n_tiles, num_slots)
    # mask only when some tile could cover rows beyond the real extent
    needs_mask = (rows % tile_rows != 0) or (num_slots * tiles_per_slot != n_tiles)

    if needs_mask:
        def in_map(c, i):
            # clamp so surplus tiles re-read a valid block (their contribution
            # is masked to zero inside the kernel)
            return (jnp.minimum(c * tiles_per_slot + i, n_tiles - 1), 0)
    else:
        def in_map(c, i):
            return (c * tiles_per_slot + i, 0)

    kernel = functools.partial(
        _rmse_kernel,
        rows=rows,
        tile_rows=tile_rows,
        tiles_per_slot=tiles_per_slot,
        needs_mask=needs_mask,
    )

    partials = pl.pallas_call(
        kernel,
        out_shape=jax.ShapeDtypeStruct((num_slots * OUT_ROWS, LANES), jnp.float32),
        grid_spec=pltpu.PrefetchScalarGridSpec(
            num_scalar_prefetch=0,
            grid=(num_slots, tiles_per_slot),
            in_specs=[
                pl.BlockSpec((tile_rows, LANES), in_map),
                pl.BlockSpec((tile_rows, LANES), in_map),
            ],
            out_specs=pl.BlockSpec((OUT_ROWS, LANES), lambda c, i: (c, 0)),
            scratch_shapes=[pltpu.VMEM((tile_rows, LANES), jnp.float32)],
        ),
        compiler_params=pltpu.CompilerParams(
            dimension_semantics=("parallel", "arbitrary"),
        ),
    )(yh2, yy2)

    # Tiny scalar epilogue: combine per-slot partial sums of squares.
    total_sq = jnp.sum(partials[::OUT_ROWS, 0])
    return jnp.sqrt(total_sq / jnp.float32(total_n))


if __name__ == "__main__":
    key = jax.random.PRNGKey(0)
    k1, k2 = jax.random.split(key)
    yhat = jax.random.normal(k1, (2, 4, 16, 16), dtype=jnp.float32)
    y = jax.random.normal(k2, (2, 4, 16, 16), dtype=jnp.float32)

    result = jax.block_until_ready(rmse_loss(yhat, y))

    # reference check (plain JAX, same semantics as torch.sqrt(MSELoss(yhat, y)))
    ref = jnp.sqrt(jnp.mean((yhat - y) ** 2))
    assert jnp.allclose(result, ref, rtol=1e-5, atol=1e-6), (result, ref)

    print("KERNEL_OK")
</pallas_src>

<mosaic_0001>
module attributes {stable_mosaic.version = 11 : i64} {
  func.func @_rmse_kernel(%arg0: i32, %arg1: i32, %arg2: memref<16x128xf32, #tpu.memory_space<vmem>>, %arg3: memref<16x128xf32, #tpu.memory_space<vmem>>, %arg4: memref<8x128xf32, #tpu.memory_space<vmem>>, %arg5: memref<16x128xf32, #tpu.memory_space<vmem>>) attributes {dimension_semantics = [#tpu.dimension_semantics<parallel>, #tpu.dimension_semantics<arbitrary>], iteration_bounds = array<i64: 1, 1>, scalar_prefetch = 0 : i64, scratch_operands = 1 : i64, tpu.core_type = #tpu.core_type<tc>, window_params = [{transform_indices = @transform_0, window_bounds = array<i64: 16, 128>}, {transform_indices = @transform_1, window_bounds = array<i64: 16, 128>}, {transform_indices = @transform_2, window_bounds = array<i64: 8, 128>}]} {
    %c0_i32 = arith.constant 0 : i32
    %0 = arith.cmpi eq, %arg1, %c0_i32 : i32
    %1 = arith.extui %0 : i1 to i32
    %c0_i32_0 = arith.constant 0 : i32
    %2 = arith.cmpi ne, %1, %c0_i32_0 : i32
    scf.if %2 {
      %cst = arith.constant 0.000000e+00 : f32
      %13 = vector.broadcast %cst : f32 to vector<16x128xf32>
      %c0_10 = arith.constant 0 : index
      %c0_11 = arith.constant 0 : index
      %14 = vector.load %arg5[%c0_10, %c0_11] : memref<16x128xf32, #tpu.memory_space<vmem>>, vector<16x128xf32>
      tpu.vector_store %arg5[%c0_10, %c0_11], %13 {strides = array<i32>} : memref<16x128xf32, #tpu.memory_space<vmem>>, vector<16x128xf32>,
    } else {
    }
    %c0 = arith.constant 0 : index
    %c0_1 = arith.constant 0 : index
    %3 = vector.load %arg2[%c0, %c0_1] : memref<16x128xf32, #tpu.memory_space<vmem>>, vector<16x128xf32>
    %c0_2 = arith.constant 0 : index
    %c0_3 = arith.constant 0 : index
    %4 = vector.load %arg3[%c0_2, %c0_3] : memref<16x128xf32, #tpu.memory_space<vmem>>, vector<16x128xf32>
    %5 = arith.subf %3, %4 : vector<16x128xf32>
    %6 = arith.mulf %5, %5 : vector<16x128xf32>
    %c0_4 = arith.constant 0 : index
    %c0_5 = arith.constant 0 : index
    %7 = vector.load %arg5[%c0_4, %c0_5] : memref<16x128xf32, #tpu.memory_space<vmem>>, vector<16x128xf32>
    %8 = arith.addf %7, %6 : vector<16x128xf32>
    %c0_6 = arith.constant 0 : index
    %c0_7 = arith.constant 0 : index
    %9 = vector.load %arg5[%c0_6, %c0_7] : memref<16x128xf32, #tpu.memory_space<vmem>>, vector<16x128xf32>
    tpu.vector_store %arg5[%c0_6, %c0_7], %8 {strides = array<i32>} : memref<16x128xf32, #tpu.memory_space<vmem>>, vector<16x128xf32>,
    %c0_i32_8 = arith.constant 0 : i32
    %10 = arith.cmpi eq, %arg1, %c0_i32_8 : i32
    %11 = arith.extui %10 : i1 to i32
    %c0_i32_9 = arith.constant 0 : i32
    %12 = arith.cmpi ne, %11, %c0_i32_9 : i32
    scf.if %12 {
      %c0_10 = arith.constant 0 : index
      %c0_11 = arith.constant 0 : index
      %13 = vector.load %arg5[%c0_10, %c0_11] : memref<16x128xf32, #tpu.memory_space<vmem>>, vector<16x128xf32>
      %14 = vector.shape_cast %13 : vector<16x128xf32> to vector<1x16x128xf32>
      %cst = arith.constant dense<0.000000e+00> : vector<1xf32>
      %15 = vector.multi_reduction <add>, %14, %cst [1, 2] : vector<1x16x128xf32> to vector<1xf32>
      %16 = vector.shape_cast %15 : vector<1xf32> to vector<1x1x1xf32>
      %17 = vector.extract %16[0, 0, 0] : f32 from vector<1x1x1xf32>
      %18 = vector.broadcast %17 : f32 to vector<8x128xf32>
      %c0_12 = arith.constant 0 : index
      %c0_13 = arith.constant 0 : index
      %19 = vector.load %arg4[%c0_12, %c0_13] : memref<8x128xf32, #tpu.memory_space<vmem>>, vector<8x128xf32>
      tpu.vector_store %arg4[%c0_12, %c0_13], %18 {strides = array<i32>} : memref<8x128xf32, #tpu.memory_space<vmem>>, vector<8x128xf32>,
    } else {
    }
    return
  }
  func.func @transform_0(%arg0: i32, %arg1: i32) -> (i32, i32) {
    %c1_i32 = arith.constant 1 : i32
    %0 = arith.muli %arg0, %c1_i32 : i32
    %1 = arith.addi %0, %arg1 : i32
    %c0_i32 = arith.constant 0 : i32
    %c0_i32_0 = arith.constant 0 : i32
    return %1, %c0_i32 : i32, i32
  }
  func.func @transform_1(%arg0: i32, %arg1: i32) -> (i32, i32) {
    %c1_i32 = arith.constant 1 : i32
    %0 = arith.muli %arg0, %c1_i32 : i32
    %1 = arith.addi %0, %arg1 : i32
    %c0_i32 = arith.constant 0 : i32
    %c0_i32_0 = arith.constant 0 : i32
    return %1, %c0_i32 : i32, i32
  }
  func.func @transform_2(%arg0: i32, %arg1: i32) -> (i32, i32) {
    %c0_i32 = arith.constant 0 : i32
    %c0_i32_0 = arith.constant 0 : i32
    return %arg0, %c0_i32 : i32, i32
  }
}

</mosaic_0001>

<llo_original>
// kernel: tpu_custom_call.1
$region0: #{tpu_custom_call.1}
  #allocation0 [shape = 'u32[]', space=smem, size = 0x4, offset = 0x4, fixed_abs, tag = 'smem constant byte address 0x4 - core index']
  #allocation1 [shape = 'u32[144,128]{1,0:T(1,128)}', space=vmem, size = 0x12000, scoped, tag = 'internal scratch']
  #allocation2 [shape = 'f32[16,128]{1,0:T(8,128)}', space=vmem, size = 0x2000, scoped, tag = 'scratch operand']
  %s0 = inlined_call_operand.hbm [shape: f32[16,128], index: 0, kind: input, shape index: {}]
  %s1 = inlined_call_operand.hbm [shape: f32[16,128], index: 1, kind: input, shape index: {}]
  %s2 = inlined_call_operand.hbm [shape: f32[8,128], index: 2, kind: output, shape index: {}]
  %s3 = sld [smem:[#allocation0]]
  $region34: #{tpu_custom_call.1} parent=0
    _
  %s5 = ssub.s32 1, %s3
  %s6 = scalar_select 0, %s5, %s3
  $region1: #{tpu_custom_call.1} parent=0
    #allocation3 [shape = 'u8[8192]{0}', space=vmem, size = 0x2000, scoped, tag = 'input window, operand 0, single buffered']
    #allocation4 [shape = 's32[1]{0}', space=sflag, size = 0x4, scoped, tag = 'scoped memory for tpu_custom_call.1']
    #allocation5 [shape = 's32[1]{0}', space=sflag, size = 0x4, scoped, tag = 'scoped memory for tpu_custom_call.1']
    #allocation6 [shape = 'u8[8192]{0}', space=vmem, size = 0x2000, scoped, tag = 'input window, operand 1, single buffered']
    #allocation7 [shape = 's32[1]{0}', space=sflag, size = 0x4, scoped, tag = 'scoped memory for tpu_custom_call.1']
    #allocation8 [shape = 'u8[4096]{0}', space=vmem, size = 0x1000, scoped, tag = 'output window, operand 0, single buffered']
    %7 = vsyncpa [#allocation4], 0
    %8 = vsyncpa [#allocation7], 0
    %9 = vsyncpa [#allocation5], 0
    // Predicated region
    $region2: #{tpu_custom_call.1} parent=1 // pred_check
      _
    $region3: #{tpu_custom_call.1} parent=1 // pred_check_branch
      %11 = sbr.rel (0) target = $region5
    $region4: #{tpu_custom_call.1} parent=1 // pred_region
      %s12 = sadd.s32 0, 0
      %s13 = smul.u32 2, %s12
      %s15 = ssub.s32 256, 256
      %16 = vsyncadd [#allocation4], %s15
      %s17 = smul.addr %s13, 128
      %s18 = scalar_lea.hbm %s0, %s17
      %s19 = sshll.u32 [#allocation3], 4
      %s20 = int_to_ptr.vmem [resolvable:$true] %s19
      %25 = dma.hbm_to_vmem [thread:$0]  %s18, 256, %s20, [#allocation4], 128, 128, 8
    $region5: #{tpu_custom_call.1} parent=1 // pred_fallthru
      _
    // Predicated region
    $region6: #{tpu_custom_call.1} parent=1 // pred_check
      _
    $region7: #{tpu_custom_call.1} parent=1 // pred_check_branch
      %27 = sbr.rel (0) target = $region9
    $region8: #{tpu_custom_call.1} parent=1 // pred_region
      %s28 = sadd.s32 0, 0
      %s29 = smul.u32 2, %s28
      %s31 = ssub.s32 256, 256
      %32 = vsyncadd [#allocation7], %s31
      %s33 = smul.addr %s29, 128
      %s34 = scalar_lea.hbm %s1, %s33
      %s35 = sshll.u32 [#allocation6], 4
      %s36 = int_to_ptr.vmem [resolvable:$true] %s35
      %41 = dma.hbm_to_vmem [thread:$0]  %s34, 256, %s36, [#allocation7], 128, 128, 8
    $region9: #{tpu_custom_call.1} parent=1 // pred_fallthru
      _
    // Predicated region
    $region10: #{tpu_custom_call.1} parent=1 // pred_check
      _
    $region11: #{tpu_custom_call.1} parent=1 // pred_check_branch
      %43 = sbr.rel (0) target = $region13
    $region12: #{tpu_custom_call.1} parent=1 // pred_region
      %44 = dma.done [#allocation4], 256
    $region13: #{tpu_custom_call.1} parent=1 // pred_fallthru
      _
    // Predicated region
    $region14: #{tpu_custom_call.1} parent=1 // pred_check
      _
    $region15: #{tpu_custom_call.1} parent=1 // pred_check_branch
      %46 = sbr.rel (0) target = $region17
    $region16: #{tpu_custom_call.1} parent=1 // pred_region
      %47 = dma.done [#allocation7], 256
    $region17: #{tpu_custom_call.1} parent=1 // pred_fallthru
      _
    %s48 = sadd.s32 0, 0
    %s49 = smul.u32 2, %s48
    %s50 = sadd.s32 0, 0
    %s51 = smul.u32 2, %s50
    %p52 = scmp.eq.s32.totalorder 0, 0
    // Predicated region
    $region18: #{tpu_custom_call.1} parent=1 // pred_check
      %p53 = pneg %p52
    $region19: #{tpu_custom_call.1} parent=1 // pred_check_branch
      %55 = sbr.rel (%p53) target = $region21
    $region20: #{tpu_custom_call.1} parent=1 // pred_region
      %56 = vst [vmem:[#allocation2] sm:$0xff] 0.0
      %57 = vst [vmem:[#allocation2 + $0x8] sm:$0xff] 0.0
    $region21: #{tpu_custom_call.1} parent=1 // pred_fallthru
      _
    %v58 = vld [vmem:[#allocation3] sm:$0xff]
    %v59 = vld [vmem:[#allocation3 + $0x8] sm:$0xff]
    %v60 = vld [vmem:[#allocation6] sm:$0xff]
    %v61 = vld [vmem:[#allocation6 + $0x8] sm:$0xff]
    %v62 = vsub.f32 %v58, %v60
    %v63 = vsub.f32 %v59, %v61
    %v64 = vmul.f32 %v62, %v62
    %v65 = vmul.f32 %v63, %v63
    %v66 = vld [vmem:[#allocation2] sm:$0xff]
    %v67 = vld [vmem:[#allocation2 + $0x8] sm:$0xff]
    %v68 = vadd.f32 %v66, %v64
    %v69 = vadd.f32 %v67, %v65
    %70 = vst [vmem:[#allocation2] sm:$0xff] %v68
    %71 = vst [vmem:[#allocation2 + $0x8] sm:$0xff] %v69
    // Predicated region
    $region22: #{tpu_custom_call.1} parent=1 // pred_check
      %p72 = pneg %p52
    $region23: #{tpu_custom_call.1} parent=1 // pred_check_branch
      %74 = sbr.rel (%p72) target = $region25
    $region24: #{tpu_custom_call.1} parent=1 // pred_region
      %v75 = vld [vmem:[#allocation2] sm:$0xff]
      %v76 = vld [vmem:[#allocation2 + $0x8] sm:$0xff]
      %v77 = vadd.f32 %v75, %v76
      %78 = vadd.xlane.f32.xlu0 %v77
      %v79 = vpop.xlane.xlu0 %78
      %v80 = vrot.slane %v79, 4
      %v81 = vadd.f32 %v79, %v80
      %v82 = vrot.slane %v81, 2
      %v83 = vadd.f32 %v81, %v82
      %v84 = vrot.slane %v83, 1
      %v85 = vadd.f32 %v83, %v84
      %s86 = vtos %v85
      %v87 = vstv %s86
      %88 = vst [vmem:[#allocation8] sm:$0xff] %v87
    $region25: #{tpu_custom_call.1} parent=1 // pred_fallthru
      _
    // Predicated region
    $region26: #{tpu_custom_call.1} parent=1 // pred_check
      _
    $region27: #{tpu_custom_call.1} parent=1 // pred_check_branch
      %90 = sbr.rel (0) target = $region29
    $region28: #{tpu_custom_call.1} parent=1 // pred_region
      %s92 = ssub.s32 128, 128
      %93 = vsyncadd [#allocation5], %s92
      %s95 = sshll.u32 [#allocation8], 4
      %s96 = int_to_ptr.vmem [resolvable:$true] %s95
      %98 = dma.vmem_to_hbm [thread:$0]  %s96, 128, %s2, [#allocation5]
    $region29: #{tpu_custom_call.1} parent=1 // pred_fallthru
      _
    // Predicated region
    $region30: #{tpu_custom_call.1} parent=1 // pred_check
      _
    $region31: #{tpu_custom_call.1} parent=1 // pred_check_branch
      %100 = sbr.rel (0) target = $region33
    $region32: #{tpu_custom_call.1} parent=1 // pred_region
      %101 = dma.done [#allocation5], 128
    $region33: #{tpu_custom_call.1} parent=1 // pred_fallthru
      _
    %102 = vsyncpa [#allocation4], 1
    %103 = vsyncpa [#allocation7], 1
    %104 = vsyncpa [#allocation5], 1

</llo_original>
